<compile_context>
chip_gen: v7x
topology: tpu7x:2x2x1
jax: 0.10.0
libtpu: 0.0.40
codegen_flags: <defaults>
</compile_context>

<pallas_src>
import functools

import jax
import jax.numpy as jnp
from jax import lax
from jax.experimental import pallas as pl
from jax.experimental.pallas import tpu as pltpu


_MASK_BIG = 1e15  # additive max-pool mask magnitude; finite after squaring (128 * 1e30 << f32 max)


# ----------------------------- Pallas kernel ------------------------------- #

def gcn_encoder_kernel(x_ref, a_ref, w_ref, pm_ref, pk_ref, e_ref, mx_ref,
                       *, hidden_pad, out_pad, num_graphs_pad):
    """One GCNEncoder (conv -> relu -> fc -> mean/max pool -> L2 normalize) per grid step.

    grid=(2,), one step per side (encoder_llm_1 / encoder_llm_2).

    x_ref  [Np, Hp]       bf16 node features (embedding lookup done in JAX glue)
    a_ref  [Np, Np]       bf16 dense adjacency, A[dst, src] = edge_weight
    w_ref  [2*Hp+8, Op]   bf16 packed weights: rows [0,Hp)=w_conv, [Hp,2Hp)=w_fc,
                          row 2Hp = b_conv, row 2Hp+1 = b_fc (rest zero padding)
    pm_ref [Gp, Np]       f32 mean-pool matrix (onehot / node count; zero rows for pad graphs)
    pk_ref [Np, Gp]       f32 additive max-pool mask (0 = member, -1e15 = non-member / pad node)
    e_ref  [Gp, 2*Op]     f32 out: normalized [mean | max] embedding, two full 128-lane halves
    mx_ref [Gp, Op]       f32 VMEM scratch holding the max-pool rows
    """
    Hp, Op = hidden_pad, out_pad

    x = x_ref[...]                                        # [Np, Hp] bf16
    wc = w_ref[0:Hp, :]                                   # [Hp, Hp] bf16 (aligned static slice)
    wf = w_ref[Hp:2 * Hp, :]                              # [Hp, Op] bf16
    bias_blk = w_ref[2 * Hp:2 * Hp + 8, :].astype(jnp.float32)   # [8, Op]
    bc = bias_blk[0:1, :]                                 # [1, Op]
    bf = bias_blk[1:2, :]                                 # [1, Op]

    # GCNConv(add_self_loops=False, normalize=False): h = A @ (x W) + b ; then ReLU.
    # bf16 MXU operands, f32 accumulation.
    xw = jnp.dot(x, wc, preferred_element_type=jnp.float32)               # [Np, Hp] f32
    h = jnp.dot(a_ref[...], xw.astype(jnp.bfloat16),
                preferred_element_type=jnp.float32) + bc
    h = jnp.maximum(h, 0.0)                               # ReLU; dropout p=0.0 -> identity
    y = jnp.dot(h.astype(jnp.bfloat16), wf,
                preferred_element_type=jnp.float32) + bf                   # [Np, Op] f32

    # global_mean_pool as a tiny f32 matmul (padded-graph rows of pm are all-zero).
    mean_x = jnp.dot(pm_ref[...], y, preferred_element_type=jnp.float32)   # [Gp, Op]

    # global_max_pool: per-graph additive mask (VPU add) + cross-sublane max; each row is
    # written straight into the VMEM scratch (no concatenate). Gp is static and tiny.
    for g in range(num_graphs_pad):
        mx_ref[g:g + 1, :] = jnp.max(y + pk_ref[:, g:g + 1], axis=0, keepdims=True)
    max_x = mx_ref[...]                                                    # [Gp, Op]

    # F.normalize(dim=1) over concat([mean, max]) without materializing the concat.
    # Padded out-lanes of y are exactly zero, so they contribute nothing to the norm.
    sumsq = (jnp.sum(mean_x * mean_x, axis=1, keepdims=True)
             + jnp.sum(max_x * max_x, axis=1, keepdims=True))              # [Gp, 1]
    inv_norm = lax.rsqrt(jnp.maximum(sumsq, 1e-24))        # eps=1e-12 -> eps^2; EUP rsqrt
    e_ref[:, 0:Op] = mean_x * inv_norm                     # full (8,128) unmasked stores
    e_ref[:, Op:2 * Op] = max_x * inv_norm


# ------------------------------ JAX wrappers -------------------------------- #

def _pad2(a, rows, cols, value=0.0):
    return jnp.pad(a, ((0, rows - a.shape[0]), (0, cols - a.shape[1])),
                   constant_values=value)


def _round_up(v, m):
    return (v + m - 1) // m * m


def dense_adjacency(edge_index, edge_weight, num_nodes):
    """A[dst, src] = edge_weight (matches PyG message flow source -> target)."""
    src, dst = edge_index[0], edge_index[1]
    return jnp.zeros((num_nodes, num_nodes), jnp.float32).at[dst, src].add(edge_weight)


def graph_matching_forward(params, data, temperature, *, hidden_pad=128, out_pad=128):
    """Fused-kernel forward; returns (emb_llm_1, emb_llm_2, sim_matrix)."""
    G = int(data["num_graphs"])
    H = params["llm_1"]["w_conv"].shape[0]
    O = params["llm_1"]["w_fc"].shape[1]
    assert hidden_pad == out_pad and out_pad % 128 == 0 and out_pad >= max(H, O)

    Gp = max(_round_up(G, 8), 8)
    Np = max(_round_up(max(data["x_llm_1"].shape[0], data["x_llm_2"].shape[0]), 8), 8)

    xs, adjs, slabs, pmeans, pmasks = [], [], [], [], []
    for side in ("llm_1", "llm_2"):
        p = params[side]
        x_ids = data[f"x_{side}"]
        batch = data[f"x_{side}_batch"]
        N = x_ids.shape[0]

        feat = jnp.take(p["embedding"], x_ids, axis=0)                     # [N, H] f32 gather
        adj = dense_adjacency(data[f"edge_index_{side}"],
                              data[f"edge_attr_{side}"], N)                # [N, N]
        xs.append(_pad2(feat, Np, hidden_pad).astype(jnp.bfloat16))
        adjs.append(_pad2(adj, Np, Np).astype(jnp.bfloat16))

        # One packed weight slab per side (static views in the kernel).
        slab = jnp.concatenate([
            _pad2(p["w_conv"], hidden_pad, out_pad),
            _pad2(p["w_fc"], hidden_pad, out_pad),
            _pad2(p["b_conv"], 1, out_pad),
            _pad2(p["b_fc"], 1, out_pad),
            jnp.zeros((6, out_pad), jnp.float32),
        ], axis=0).astype(jnp.bfloat16)                                    # [2*Hp+8, Op]
        slabs.append(slab)

        onehot = (batch[None, :] == jnp.arange(G)[:, None]).astype(jnp.float32)   # [G, N]
        counts = jnp.maximum(onehot.sum(axis=1, keepdims=True), 1.0)
        pmeans.append(_pad2(onehot / counts, Gp, Np))                      # zero pad rows/cols
        addmask = jnp.where(onehot.T > 0, 0.0, -_MASK_BIG)                 # [N, G]
        pmasks.append(_pad2(addmask, Np, Gp, value=-_MASK_BIG))            # pad = non-member

    x_all = jnp.stack(xs)          # [2, Np, Hp]       bf16
    a_all = jnp.stack(adjs)        # [2, Np, Np]       bf16
    w_all = jnp.stack(slabs)       # [2, 2*Hp+8, Op]   bf16
    pm_all = jnp.stack(pmeans)     # [2, Gp, Np]       f32
    pk_all = jnp.stack(pmasks)     # [2, Np, Gp]       f32

    kern = functools.partial(gcn_encoder_kernel, hidden_pad=hidden_pad,
                             out_pad=out_pad, num_graphs_pad=Gp)
    side_map = lambda s: (s, 0, 0)

    in_bytes = sum(int(a.size) * a.dtype.itemsize
                   for a in (x_all, a_all, w_all, pm_all, pk_all))
    out_bytes = 2 * Gp * 2 * out_pad * 4
    flops_side = (2 * Np * hidden_pad * hidden_pad + 2 * Np * Np * hidden_pad
                  + 2 * Np * hidden_pad * out_pad + 2 * Gp * Np * out_pad)

    e_all = pl.pallas_call(
        kern,
        out_shape=jax.ShapeDtypeStruct((2, Gp, 2 * out_pad), jnp.float32),
        grid_spec=pltpu.PrefetchScalarGridSpec(
            num_scalar_prefetch=0,
            grid=(2,),
            in_specs=[
                pl.BlockSpec((None, Np, hidden_pad), side_map),            # x
                pl.BlockSpec((None, Np, Np), side_map),                    # adjacency
                pl.BlockSpec((None, 2 * hidden_pad + 8, out_pad), side_map),   # weight slab
                pl.BlockSpec((None, Gp, Np), side_map),                    # mean-pool matrix
                pl.BlockSpec((None, Np, Gp), side_map),                    # additive max mask
            ],
            out_specs=pl.BlockSpec((None, Gp, 2 * out_pad), side_map),
            scratch_shapes=[pltpu.VMEM((Gp, out_pad), jnp.float32)],
        ),
        compiler_params=pltpu.CompilerParams(
            dimension_semantics=("parallel",),          # two encoders -> two TCs on v7x
            vmem_limit_bytes=16 * 1024 * 1024,
        ),
        cost_estimate=pl.CostEstimate(flops=2 * flops_side,
                                      transcendentals=2 * Gp,
                                      bytes_accessed=in_bytes + out_bytes),
    )(x_all, a_all, w_all, pm_all, pk_all)

    # Strip lane / graph padding (layout plumbing); the tiny [G,2O]x[2O,G] similarity matmul
    # lives in JAX so the two encoder grid steps stay fully independent.
    emb1 = jnp.concatenate([e_all[0, :G, :O], e_all[0, :G, out_pad:out_pad + O]], axis=1)
    emb2 = jnp.concatenate([e_all[1, :G, :O], e_all[1, :G, out_pad:out_pad + O]], axis=1)
    sim = jnp.dot(emb1, emb2.T) / temperature
    return emb1, emb2, sim


# ----------------------------- Reference (JAX) ------------------------------ #

def reference_forward(params, data, temperature, *, bf16_matmuls=False):
    """Plain-JAX reference. bf16_matmuls=True mirrors the kernel's MXU dtypes exactly."""
    G = int(data["num_graphs"])
    embs = []
    for side in ("llm_1", "llm_2"):
        p = params[side]
        x_ids = data[f"x_{side}"]
        batch = data[f"x_{side}_batch"]
        N = x_ids.shape[0]
        x = jnp.take(p["embedding"], x_ids, axis=0)
        adj = dense_adjacency(data[f"edge_index_{side}"], data[f"edge_attr_{side}"], N)
        wc, wf, bc, bf_ = p["w_conv"], p["w_fc"], p["b_conv"], p["b_fc"]
        if bf16_matmuls:
            cast = lambda a: a.astype(jnp.bfloat16)
            bc = cast(bc).astype(jnp.float32)
            bf_ = cast(bf_).astype(jnp.float32)
            xw = jnp.dot(cast(x), cast(wc), preferred_element_type=jnp.float32)
            h = jnp.maximum(jnp.dot(cast(adj), cast(xw),
                                    preferred_element_type=jnp.float32) + bc, 0.0)
            y = jnp.dot(cast(h), cast(wf), preferred_element_type=jnp.float32) + bf_
        else:
            h = jnp.maximum(adj @ (x @ wc) + bc, 0.0)
            y = h @ wf + bf_
        onehot = (batch[None, :] == jnp.arange(G)[:, None]).astype(jnp.float32)  # [G, N]
        counts = jnp.maximum(onehot.sum(axis=1, keepdims=True), 1.0)
        mean_x = (onehot / counts) @ y
        member = onehot[:, :, None] > 0                                          # [G, N, 1]
        max_x = jnp.max(jnp.where(member, y[None, :, :], -jnp.inf), axis=1)      # [G, O]
        embs.append(jnp.concatenate([mean_x, max_x], axis=1))

    def norm(e):
        sumsq = jnp.sum(e * e, axis=1, keepdims=True)
        return e * lax.rsqrt(jnp.maximum(sumsq, 1e-24))

    e1, e2 = norm(embs[0]), norm(embs[1])
    return e1, e2, (e1 @ e2.T) / temperature


# --------------------------------- Main ------------------------------------- #

if __name__ == "__main__":
    key = jax.random.PRNGKey(0)

    # Model hyperparameters (small, consistent with the module defaults)
    num_nodes_llm_1 = 50   # embedding vocab size, side 1
    num_nodes_llm_2 = 60   # embedding vocab size, side 2
    hidden_channels = 32
    out_channels = 16
    temperature = 0.5

    # Batch of graphs: 2 graphs per side, 8 nodes each -> 16 nodes per side
    G = 2
    nodes_per_graph = 8
    N = G * nodes_per_graph

    def init_encoder(key, vocab, H, O):
        k = jax.random.split(key, 5)
        return {
            "embedding": 0.1 * jax.random.normal(k[0], (vocab, H), jnp.float32),
            "w_conv": 0.1 * jax.random.normal(k[1], (H, H), jnp.float32),
            "b_conv": 0.1 * jax.random.normal(k[2], (1, H), jnp.float32),
            "w_fc": 0.1 * jax.random.normal(k[3], (H, O), jnp.float32),
            "b_fc": 0.1 * jax.random.normal(k[4], (1, O), jnp.float32),
        }

    k1, k2, kd = jax.random.split(key, 3)
    params = {
        "llm_1": init_encoder(k1, num_nodes_llm_1, hidden_channels, out_channels),
        "llm_2": init_encoder(k2, num_nodes_llm_2, hidden_channels, out_channels),
    }

    # Deterministic synthetic graph data (ring edges inside each graph, both directions)
    def make_graph_data(key, vocab):
        ka, kb = jax.random.split(key)
        x_ids = jax.random.randint(ka, (N,), 0, vocab, dtype=jnp.int32)
        src, dst = [], []
        for g in range(G):
            base = g * nodes_per_graph
            for i in range(nodes_per_graph):
                a, b = base + i, base + (i + 1) % nodes_per_graph
                src += [a, b]
                dst += [b, a]
        edge_index = jnp.array([src, dst], dtype=jnp.int32)
        edge_attr = jax.random.uniform(kb, (edge_index.shape[1],), jnp.float32,
                                       minval=0.1, maxval=1.0)
        batch = jnp.repeat(jnp.arange(G, dtype=jnp.int32), nodes_per_graph)
        return x_ids, edge_index, edge_attr, batch

    kd1, kd2 = jax.random.split(kd)
    x1, ei1, ea1, b1 = make_graph_data(kd1, num_nodes_llm_1)
    x2, ei2, ea2, b2 = make_graph_data(kd2, num_nodes_llm_2)

    data = {
        "x_llm_1": x1, "edge_index_llm_1": ei1, "edge_attr_llm_1": ea1, "x_llm_1_batch": b1,
        "x_llm_2": x2, "edge_index_llm_2": ei2, "edge_attr_llm_2": ea2, "x_llm_2_batch": b2,
        "num_graphs": G,
    }

    emb1, emb2, sim = graph_matching_forward(params, data, temperature)
    jax.block_until_ready((emb1, emb2, sim))

    # Tight check against a reference that mirrors the kernel's bf16-MXU / f32-accumulate math.
    m1, m2, msim = reference_forward(params, data, temperature, bf16_matmuls=True)
    assert jnp.allclose(emb1, m1, atol=2e-3), "emb_llm_1 mismatch vs bf16-matched reference"
    assert jnp.allclose(emb2, m2, atol=2e-3), "emb_llm_2 mismatch vs bf16-matched reference"
    assert jnp.allclose(sim, msim, atol=5e-3), "sim_matrix mismatch vs bf16-matched reference"

    # Looser sanity check against the full-f32 (PyTorch-semantics) reference; the only
    # difference is bf16 rounding on the MXU operands.
    r1, r2, rsim = reference_forward(params, data, temperature, bf16_matmuls=False)
    assert jnp.allclose(emb1, r1, atol=5e-2), "emb_llm_1 mismatch vs f32 reference"
    assert jnp.allclose(emb2, r2, atol=5e-2), "emb_llm_2 mismatch vs f32 reference"
    assert jnp.allclose(sim, rsim, atol=1e-1), "sim_matrix mismatch vs f32 reference"

    print("KERNEL_OK")
</pallas_src>

<mosaic_0001>
module attributes {stable_mosaic.version = 11 : i64} {
  func.func @gcn_encoder_kernel(%arg0: i32, %arg1: memref<1x16x128xbf16, #tpu.memory_space<vmem>>, %arg2: memref<1x16x16xbf16, #tpu.memory_space<vmem>>, %arg3: memref<1x264x128xbf16, #tpu.memory_space<vmem>>, %arg4: memref<1x8x16xf32, #tpu.memory_space<vmem>>, %arg5: memref<1x16x8xf32, #tpu.memory_space<vmem>>, %arg6: memref<1x8x256xf32, #tpu.memory_space<vmem>>, %arg7: memref<8x128xf32, #tpu.memory_space<vmem>>) attributes {dimension_semantics = [#tpu.dimension_semantics<parallel>], iteration_bounds = array<i64: 2>, scalar_prefetch = 0 : i64, scratch_operands = 1 : i64, tpu.core_type = #tpu.core_type<tc>, window_params = [{transform_indices = @transform_0, window_bounds = array<i64: 1, 16, 128>}, {transform_indices = @transform_1, window_bounds = array<i64: 1, 16, 16>}, {transform_indices = @transform_2, window_bounds = array<i64: 1, 264, 128>}, {transform_indices = @transform_3, window_bounds = array<i64: 1, 8, 16>}, {transform_indices = @transform_4, window_bounds = array<i64: 1, 16, 8>}, {transform_indices = @transform_5, window_bounds = array<i64: 1, 8, 256>}]} {
    %c0 = arith.constant 0 : index
    %c0_0 = arith.constant 0 : index
    %c0_1 = arith.constant 0 : index
    %0 = vector.load %arg1[%c0, %c0_0, %c0_1] : memref<1x16x128xbf16, #tpu.memory_space<vmem>>, vector<1x16x128xbf16>
    %1 = vector.shape_cast %0 : vector<1x16x128xbf16> to vector<16x128xbf16>
    %c0_2 = arith.constant 0 : index
    %c0_3 = arith.constant 0 : index
    %c0_4 = arith.constant 0 : index
    %2 = vector.load %arg3[%c0_2, %c0_3, %c0_4] : memref<1x264x128xbf16, #tpu.memory_space<vmem>>, vector<1x128x128xbf16>
    %3 = vector.shape_cast %2 : vector<1x128x128xbf16> to vector<128x128xbf16>
    %c0_5 = arith.constant 0 : index
    %c128 = arith.constant 128 : index
    %c0_6 = arith.constant 0 : index
    %4 = vector.load %arg3[%c0_5, %c128, %c0_6] : memref<1x264x128xbf16, #tpu.memory_space<vmem>>, vector<1x128x128xbf16>
    %5 = vector.shape_cast %4 : vector<1x128x128xbf16> to vector<128x128xbf16>
    %c0_7 = arith.constant 0 : index
    %c256 = arith.constant 256 : index
    %c0_8 = arith.constant 0 : index
    %6 = vector.load %arg3[%c0_7, %c256, %c0_8] : memref<1x264x128xbf16, #tpu.memory_space<vmem>>, vector<1x8x128xbf16>
    %7 = vector.shape_cast %6 : vector<1x8x128xbf16> to vector<8x128xbf16>
    %8 = arith.extf %7 : vector<8x128xbf16> to vector<8x128xf32>
    %9 = vector.extract_strided_slice %8 {offsets = [0, 0], sizes = [1, 128], strides = [1, 1]} : vector<8x128xf32> to vector<1x128xf32>
    %10 = vector.extract_strided_slice %8 {offsets = [1, 0], sizes = [1, 128], strides = [1, 1]} : vector<8x128xf32> to vector<1x128xf32>
    %cst = arith.constant dense<0.000000e+00> : vector<16x128xf32>
    %11 = tpu.matmul %1, %3, %cst {dimension_numbers = #tpu.dot_dimension_numbers<[1], [0], [0], [1], [0, 0, 1, 1], [], []>} : vector<16x128xbf16>, vector<128x128xbf16>, vector<16x128xf32> -> vector<16x128xf32>
    %c0_9 = arith.constant 0 : index
    %c0_10 = arith.constant 0 : index
    %c0_11 = arith.constant 0 : index
    %12 = vector.load %arg2[%c0_9, %c0_10, %c0_11] : memref<1x16x16xbf16, #tpu.memory_space<vmem>>, vector<1x16x16xbf16>
    %13 = vector.shape_cast %12 : vector<1x16x16xbf16> to vector<16x16xbf16>
    %14 = arith.truncf %11 : vector<16x128xf32> to vector<16x128xbf16>
    %cst_12 = arith.constant dense<0.000000e+00> : vector<16x128xf32>
    %15 = tpu.matmul %13, %14, %cst_12 {dimension_numbers = #tpu.dot_dimension_numbers<[1], [0], [0], [1], [0, 0, 1, 1], [], []>} : vector<16x16xbf16>, vector<16x128xbf16>, vector<16x128xf32> -> vector<16x128xf32>
    %16 = vector.broadcast %9 : vector<1x128xf32> to vector<16x128xf32>
    %17 = arith.addf %15, %16 : vector<16x128xf32>
    %cst_13 = arith.constant 0.000000e+00 : f32
    %18 = vector.broadcast %cst_13 : f32 to vector<16x128xf32>
    %19 = arith.maximumf %17, %18 : vector<16x128xf32>
    %20 = arith.truncf %19 : vector<16x128xf32> to vector<16x128xbf16>
    %cst_14 = arith.constant dense<0.000000e+00> : vector<16x128xf32>
    %21 = tpu.matmul %20, %5, %cst_14 {dimension_numbers = #tpu.dot_dimension_numbers<[1], [0], [0], [1], [0, 0, 1, 1], [], []>} : vector<16x128xbf16>, vector<128x128xbf16>, vector<16x128xf32> -> vector<16x128xf32>
    %22 = vector.broadcast %10 : vector<1x128xf32> to vector<16x128xf32>
    %23 = arith.addf %21, %22 : vector<16x128xf32>
    %c0_15 = arith.constant 0 : index
    %c0_16 = arith.constant 0 : index
    %c0_17 = arith.constant 0 : index
    %24 = vector.load %arg4[%c0_15, %c0_16, %c0_17] : memref<1x8x16xf32, #tpu.memory_space<vmem>>, vector<1x8x16xf32>
    %25 = vector.shape_cast %24 : vector<1x8x16xf32> to vector<8x16xf32>
    %cst_18 = arith.constant dense<0.000000e+00> : vector<8x128xf32>
    %26 = tpu.matmul %25, %23, %cst_18 {dimension_numbers = #tpu.dot_dimension_numbers<[1], [0], [0], [1], [0, 0, 1, 1], [], []>} : vector<8x16xf32>, vector<16x128xf32>, vector<8x128xf32> -> vector<8x128xf32>
    %c0_19 = arith.constant 0 : index
    %c0_20 = arith.constant 0 : index
    %c0_21 = arith.constant 0 : index
    %27 = vector.load %arg5[%c0_19, %c0_20, %c0_21] : memref<1x16x8xf32, #tpu.memory_space<vmem>>, vector<1x16x1xf32>
    %28 = vector.shape_cast %27 : vector<1x16x1xf32> to vector<16x1xf32>
    %29 = vector.broadcast %28 : vector<16x1xf32> to vector<16x128xf32>
    %30 = arith.addf %23, %29 : vector<16x128xf32>
    %cst_22 = arith.constant dense<0xFF800000> : vector<128xf32>
    %31 = vector.multi_reduction <maximumf>, %30, %cst_22 [0] : vector<16x128xf32> to vector<128xf32>
    %32 = vector.shape_cast %31 : vector<128xf32> to vector<1x128xf32>
    %c0_23 = arith.constant 0 : index
    %c0_24 = arith.constant 0 : index
    %33 = vector.load %arg7[%c0_23, %c0_24] : memref<8x128xf32, #tpu.memory_space<vmem>>, vector<1x128xf32>
    tpu.vector_store %arg7[%c0_23, %c0_24], %32 {strides = array<i32>} : memref<8x128xf32, #tpu.memory_space<vmem>>, vector<1x128xf32>,
    %c0_25 = arith.constant 0 : index
    %c0_26 = arith.constant 0 : index
    %c1 = arith.constant 1 : index
    %34 = vector.load %arg5[%c0_25, %c0_26, %c1] : memref<1x16x8xf32, #tpu.memory_space<vmem>>, vector<1x16x1xf32>
    %35 = vector.shape_cast %34 : vector<1x16x1xf32> to vector<16x1xf32>
    %36 = vector.broadcast %35 : vector<16x1xf32> to vector<16x128xf32>
    %37 = arith.addf %23, %36 : vector<16x128xf32>
    %cst_27 = arith.constant dense<0xFF800000> : vector<128xf32>
    %38 = vector.multi_reduction <maximumf>, %37, %cst_27 [0] : vector<16x128xf32> to vector<128xf32>
    %39 = vector.shape_cast %38 : vector<128xf32> to vector<1x128xf32>
    %c1_28 = arith.constant 1 : index
    %c0_29 = arith.constant 0 : index
    %40 = vector.load %arg7[%c1_28, %c0_29] : memref<8x128xf32, #tpu.memory_space<vmem>>, vector<1x128xf32>
    tpu.vector_store %arg7[%c1_28, %c0_29], %39 {strides = array<i32>} : memref<8x128xf32, #tpu.memory_space<vmem>>, vector<1x128xf32>,
    %c0_30 = arith.constant 0 : index
    %c0_31 = arith.constant 0 : index
    %c2 = arith.constant 2 : index
    %41 = vector.load %arg5[%c0_30, %c0_31, %c2] : memref<1x16x8xf32, #tpu.memory_space<vmem>>, vector<1x16x1xf32>
    %42 = vector.shape_cast %41 : vector<1x16x1xf32> to vector<16x1xf32>
    %43 = vector.broadcast %42 : vector<16x1xf32> to vector<16x128xf32>
    %44 = arith.addf %23, %43 : vector<16x128xf32>
    %cst_32 = arith.constant dense<0xFF800000> : vector<128xf32>
    %45 = vector.multi_reduction <maximumf>, %44, %cst_32 [0] : vector<16x128xf32> to vector<128xf32>
    %46 = vector.shape_cast %45 : vector<128xf32> to vector<1x128xf32>
    %c2_33 = arith.constant 2 : index
    %c0_34 = arith.constant 0 : index
    %47 = vector.load %arg7[%c2_33, %c0_34] : memref<8x128xf32, #tpu.memory_space<vmem>>, vector<1x128xf32>
    tpu.vector_store %arg7[%c2_33, %c0_34], %46 {strides = array<i32>} : memref<8x128xf32, #tpu.memory_space<vmem>>, vector<1x128xf32>,
    %c0_35 = arith.constant 0 : index
    %c0_36 = arith.constant 0 : index
    %c3 = arith.constant 3 : index
    %48 = vector.load %arg5[%c0_35, %c0_36, %c3] : memref<1x16x8xf32, #tpu.memory_space<vmem>>, vector<1x16x1xf32>
    %49 = vector.shape_cast %48 : vector<1x16x1xf32> to vector<16x1xf32>
    %50 = vector.broadcast %49 : vector<16x1xf32> to vector<16x128xf32>
    %51 = arith.addf %23, %50 : vector<16x128xf32>
    %cst_37 = arith.constant dense<0xFF800000> : vector<128xf32>
    %52 = vector.multi_reduction <maximumf>, %51, %cst_37 [0] : vector<16x128xf32> to vector<128xf32>
    %53 = vector.shape_cast %52 : vector<128xf32> to vector<1x128xf32>
    %c3_38 = arith.constant 3 : index
    %c0_39 = arith.constant 0 : index
    %54 = vector.load %arg7[%c3_38, %c0_39] : memref<8x128xf32, #tpu.memory_space<vmem>>, vector<1x128xf32>
    tpu.vector_store %arg7[%c3_38, %c0_39], %53 {strides = array<i32>} : memref<8x128xf32, #tpu.memory_space<vmem>>, vector<1x128xf32>,
    %c0_40 = arith.constant 0 : index
    %c0_41 = arith.constant 0 : index
    %c4 = arith.constant 4 : index
    %55 = vector.load %arg5[%c0_40, %c0_41, %c4] : memref<1x16x8xf32, #tpu.memory_space<vmem>>, vector<1x16x1xf32>
    %56 = vector.shape_cast %55 : vector<1x16x1xf32> to vector<16x1xf32>
    %57 = vector.broadcast %56 : vector<16x1xf32> to vector<16x128xf32>
    %58 = arith.addf %23, %57 : vector<16x128xf32>
    %cst_42 = arith.constant dense<0xFF800000> : vector<128xf32>
    %59 = vector.multi_reduction <maximumf>, %58, %cst_42 [0] : vector<16x128xf32> to vector<128xf32>
    %60 = vector.shape_cast %59 : vector<128xf32> to vector<1x128xf32>
    %c4_43 = arith.constant 4 : index
    %c0_44 = arith.constant 0 : index
    %61 = vector.load %arg7[%c4_43, %c0_44] : memref<8x128xf32, #tpu.memory_space<vmem>>, vector<1x128xf32>
    tpu.vector_store %arg7[%c4_43, %c0_44], %60 {strides = array<i32>} : memref<8x128xf32, #tpu.memory_space<vmem>>, vector<1x128xf32>,
    %c0_45 = arith.constant 0 : index
    %c0_46 = arith.constant 0 : index
    %c5 = arith.constant 5 : index
    %62 = vector.load %arg5[%c0_45, %c0_46, %c5] : memref<1x16x8xf32, #tpu.memory_space<vmem>>, vector<1x16x1xf32>
    %63 = vector.shape_cast %62 : vector<1x16x1xf32> to vector<16x1xf32>
    %64 = vector.broadcast %63 : vector<16x1xf32> to vector<16x128xf32>
    %65 = arith.addf %23, %64 : vector<16x128xf32>
    %cst_47 = arith.constant dense<0xFF800000> : vector<128xf32>
    %66 = vector.multi_reduction <maximumf>, %65, %cst_47 [0] : vector<16x128xf32> to vector<128xf32>
    %67 = vector.shape_cast %66 : vector<128xf32> to vector<1x128xf32>
    %c5_48 = arith.constant 5 : index
    %c0_49 = arith.constant 0 : index
    %68 = vector.load %arg7[%c5_48, %c0_49] : memref<8x128xf32, #tpu.memory_space<vmem>>, vector<1x128xf32>
    tpu.vector_store %arg7[%c5_48, %c0_49], %67 {strides = array<i32>} : memref<8x128xf32, #tpu.memory_space<vmem>>, vector<1x128xf32>,
    %c0_50 = arith.constant 0 : index
    %c0_51 = arith.constant 0 : index
    %c6 = arith.constant 6 : index
    %69 = vector.load %arg5[%c0_50, %c0_51, %c6] : memref<1x16x8xf32, #tpu.memory_space<vmem>>, vector<1x16x1xf32>
    %70 = vector.shape_cast %69 : vector<1x16x1xf32> to vector<16x1xf32>
    %71 = vector.broadcast %70 : vector<16x1xf32> to vector<16x128xf32>
    %72 = arith.addf %23, %71 : vector<16x128xf32>
    %cst_52 = arith.constant dense<0xFF800000> : vector<128xf32>
    %73 = vector.multi_reduction <maximumf>, %72, %cst_52 [0] : vector<16x128xf32> to vector<128xf32>
    %74 = vector.shape_cast %73 : vector<128xf32> to vector<1x128xf32>
    %c6_53 = arith.constant 6 : index
    %c0_54 = arith.constant 0 : index
    %75 = vector.load %arg7[%c6_53, %c0_54] : memref<8x128xf32, #tpu.memory_space<vmem>>, vector<1x128xf32>
    tpu.vector_store %arg7[%c6_53, %c0_54], %74 {strides = array<i32>} : memref<8x128xf32, #tpu.memory_space<vmem>>, vector<1x128xf32>,
    %c0_55 = arith.constant 0 : index
    %c0_56 = arith.constant 0 : index
    %c7 = arith.constant 7 : index
    %76 = vector.load %arg5[%c0_55, %c0_56, %c7] : memref<1x16x8xf32, #tpu.memory_space<vmem>>, vector<1x16x1xf32>
    %77 = vector.shape_cast %76 : vector<1x16x1xf32> to vector<16x1xf32>
    %78 = vector.broadcast %77 : vector<16x1xf32> to vector<16x128xf32>
    %79 = arith.addf %23, %78 : vector<16x128xf32>
    %cst_57 = arith.constant dense<0xFF800000> : vector<128xf32>
    %80 = vector.multi_reduction <maximumf>, %79, %cst_57 [0] : vector<16x128xf32> to vector<128xf32>
    %81 = vector.shape_cast %80 : vector<128xf32> to vector<1x128xf32>
    %c7_58 = arith.constant 7 : index
    %c0_59 = arith.constant 0 : index
    %82 = vector.load %arg7[%c7_58, %c0_59] : memref<8x128xf32, #tpu.memory_space<vmem>>, vector<1x128xf32>
    tpu.vector_store %arg7[%c7_58, %c0_59], %81 {strides = array<i32>} : memref<8x128xf32, #tpu.memory_space<vmem>>, vector<1x128xf32>,
    %c0_60 = arith.constant 0 : index
    %c0_61 = arith.constant 0 : index
    %83 = vector.load %arg7[%c0_60, %c0_61] : memref<8x128xf32, #tpu.memory_space<vmem>>, vector<8x128xf32>
    %84 = arith.mulf %26, %26 : vector<8x128xf32>
    %cst_62 = arith.constant dense<0.000000e+00> : vector<8xf32>
    %85 = vector.multi_reduction <add>, %84, %cst_62 [1] : vector<8x128xf32> to vector<8xf32>
    %86 = vector.shape_cast %85 : vector<8xf32> to vector<8x1xf32>
    %87 = arith.mulf %83, %83 : vector<8x128xf32>
    %cst_63 = arith.constant dense<0.000000e+00> : vector<8xf32>
    %88 = vector.multi_reduction <add>, %87, %cst_63 [1] : vector<8x128xf32> to vector<8xf32>
    %89 = vector.shape_cast %88 : vector<8xf32> to vector<8x1xf32>
    %90 = arith.addf %86, %89 : vector<8x1xf32>
    %cst_64 = arith.constant 1.000000e-24 : f32
    %91 = vector.broadcast %cst_64 : f32 to vector<8x1xf32>
    %92 = arith.maximumf %90, %91 : vector<8x1xf32>
    %93 = math.rsqrt %92 : vector<8x1xf32>
    %94 = vector.broadcast %93 : vector<8x1xf32> to vector<8x128xf32>
    %95 = arith.mulf %26, %94 : vector<8x128xf32>
    %c0_65 = arith.constant 0 : index
    %c0_66 = arith.constant 0 : index
    %c0_67 = arith.constant 0 : index
    %96 = vector.load %arg6[%c0_65, %c0_66, %c0_67] : memref<1x8x256xf32, #tpu.memory_space<vmem>>, vector<1x8x128xf32>
    %97 = vector.shape_cast %96 : vector<1x8x128xf32> to vector<8x128xf32>
    %98 = vector.shape_cast %95 : vector<8x128xf32> to vector<1x8x128xf32>
    tpu.vector_store %arg6[%c0_65, %c0_66, %c0_67], %98 {strides = array<i32>} : memref<1x8x256xf32, #tpu.memory_space<vmem>>, vector<1x8x128xf32>,
    %99 = vector.broadcast %93 : vector<8x1xf32> to vector<8x128xf32>
    %100 = arith.mulf %83, %99 : vector<8x128xf32>
    %c0_68 = arith.constant 0 : index
    %c0_69 = arith.constant 0 : index
    %c128_70 = arith.constant 128 : index
    %101 = vector.load %arg6[%c0_68, %c0_69, %c128_70] : memref<1x8x256xf32, #tpu.memory_space<vmem>>, vector<1x8x128xf32>
    %102 = vector.shape_cast %101 : vector<1x8x128xf32> to vector<8x128xf32>
    %103 = vector.shape_cast %100 : vector<8x128xf32> to vector<1x8x128xf32>
    tpu.vector_store %arg6[%c0_68, %c0_69, %c128_70], %103 {strides = array<i32>} : memref<1x8x256xf32, #tpu.memory_space<vmem>>, vector<1x8x128xf32>,
    return
  }
  func.func @transform_0(%arg0: i32) -> (i32, i32, i32) {
    %c0_i32 = arith.constant 0 : i32
    %c0_i32_0 = arith.constant 0 : i32
    %c0_i32_1 = arith.constant 0 : i32
    return %arg0, %c0_i32, %c0_i32_0 : i32, i32, i32
  }
  func.func @transform_1(%arg0: i32) -> (i32, i32, i32) {
    %c0_i32 = arith.constant 0 : i32
    %c0_i32_0 = arith.constant 0 : i32
    %c0_i32_1 = arith.constant 0 : i32
    return %arg0, %c0_i32, %c0_i32_0 : i32, i32, i32
  }
  func.func @transform_2(%arg0: i32) -> (i32, i32, i32) {
    %c0_i32 = arith.constant 0 : i32
    %c0_i32_0 = arith.constant 0 : i32
    %c0_i32_1 = arith.constant 0 : i32
    return %arg0, %c0_i32, %c0_i32_0 : i32, i32, i32
  }
  func.func @transform_3(%arg0: i32) -> (i32, i32, i32) {
    %c0_i32 = arith.constant 0 : i32
    %c0_i32_0 = arith.constant 0 : i32
    %c0_i32_1 = arith.constant 0 : i32
    return %arg0, %c0_i32, %c0_i32_0 : i32, i32, i32
  }
  func.func @transform_4(%arg0: i32) -> (i32, i32, i32) {
    %c0_i32 = arith.constant 0 : i32
    %c0_i32_0 = arith.constant 0 : i32
    %c0_i32_1 = arith.constant 0 : i32
    return %arg0, %c0_i32, %c0_i32_0 : i32, i32, i32
  }
  func.func @transform_5(%arg0: i32) -> (i32, i32, i32) {
    %c0_i32 = arith.constant 0 : i32
    %c0_i32_0 = arith.constant 0 : i32
    %c0_i32_1 = arith.constant 0 : i32
    return %arg0, %c0_i32, %c0_i32_0 : i32, i32, i32
  }
}

</mosaic_0001>

<llo_original>
// kernel: tpu_custom_call.1
$region0: #{tpu_custom_call.1}
  #allocation0 [shape = 'u32[]', space=smem, size = 0x4, offset = 0x4, fixed_abs, tag = 'smem constant byte address 0x4 - core index']
  #allocation1 [shape = 'u32[144,128]{1,0:T(1,128)}', space=vmem, size = 0x12000, scoped, tag = 'internal scratch']
  #allocation2 [shape = 'f32[8,128]{1,0:T(8,128)}', space=vmem, size = 0x1000, scoped, tag = 'scratch operand']
  %s0 = inlined_call_operand.vmem [shape: bf16[2,16,128], index: 0, kind: input, shape index: {}]
  %s1 = inlined_call_operand.vmem [shape: bf16[2,16,16], index: 1, kind: input, shape index: {}]
  %s2 = inlined_call_operand.hbm [shape: bf16[2,264,128], index: 2, kind: input, shape index: {}]
  %s3 = inlined_call_operand.vmem [shape: f32[2,8,16], index: 3, kind: input, shape index: {}]
  %s4 = inlined_call_operand.vmem [shape: f32[2,16,8], index: 4, kind: input, shape index: {}]
  %s5 = inlined_call_operand.hbm [shape: f32[2,8,256], index: 5, kind: output, shape index: {}]
  %s6 = sld [smem:[#allocation0]]
  $region57: #{tpu_custom_call.1} parent=0
    _
  %s8 = ssub.s32 1, %s6
  %s9 = scalar_select 0, %s8, %s6
  $region1: #{tpu_custom_call.1} parent=0
    #allocation3 [shape = 'u8[135168]{0}', space=vmem, size = 0x21000, scoped, tag = 'input window, operand 2']
    #allocation4 [shape = 's32[2]{0}', space=sflag, size = 0x8, scoped, tag = 'scoped memory for tpu_custom_call.1']
    #allocation5 [shape = 's32[2]{0}', space=sflag, size = 0x8, scoped, tag = 'scoped memory for tpu_custom_call.1']
    #allocation6 [shape = 'u8[16384]{0}', space=vmem, size = 0x4000, scoped, tag = 'output window, operand 0']
    %10 = vsyncpa [#allocation4], 0
    %s11 = scalar_lea.sflag [#allocation4], 1
    %12 = vsyncpa %s11, 0
    %13 = vsyncpa [#allocation5], 0
    %s14 = scalar_lea.sflag [#allocation5], 1
    %15 = vsyncpa %s14, 0
    loop: start=0, step=1, limit=4
    $region2: #{tpu_custom_call.1} parent=1 // loop_pre_header
      _
    $region3: #{tpu_custom_call.1} parent=1 // loop_header
      %s17 = sphi 0, %s21
      %p18 = scmp.ge.s32.totalorder %s17, 4
      %s27 = sphi 0, %s29
      %s30 = sphi 0, %s27
      %s31 = sphi 0, %s30
      %s47 = sphi 0, %s31
      %s53 = sphi 0, %s55
      %s56 = sphi 0, %s53
      %s57 = sphi 0, %s56
      %s73 = sphi 0, %s57
      %s79 = sphi 0, %s81
      %s82 = sphi 0, %s79
      %s83 = sphi 0, %s82
      %s99 = sphi 0, %s83
      %s105 = sphi 0, %s107
      %s108 = sphi 0, %s105
      %s109 = sphi 0, %s108
      %s125 = sphi 0, %s109
      %s131 = sphi 0, %s133
      %s134 = sphi 0, %s131
      %s135 = sphi 0, %s134
      %s151 = sphi 0, %s135
      %s157 = sphi 0, %s159
      %s160 = sphi 0, %s157
      %s161 = sphi 0, %s160
      %s177 = sphi 0, %s161
    $region4: #{tpu_custom_call.1} parent=1 // loop_header_branch
      %20 = sbr.rel (%p18) target = $region8
    $region5: #{tpu_custom_call.1} parent=1 // loop_body
      %s22 = ssub.s32 %s17, 1
      %s23 = ssub.s32 %s17, 2
      %s24 = sadd.s32 %s17, 1
      %s25 = ssub.s32 %s17, %s24
      %p26 = scmp.eq.s32.totalorder %s25, 0
      %s28 = sadd.s32 %s27, 1
      %s29 = scalar_select %p26, %s27, %s28
      %p32 = pneg %p26
      %p33 = scmp.eq.s32.totalorder %s17, 1
      %p34 = por %p32, %p33
      %p35 = scmp.ne.s32.totalorder %s27, %s30
      %p36 = scmp.eq.s32.totalorder %s17, 0
      %p37 = por %p35, %p36
      %p38 = scmp.ne.s32.totalorder %s27, %s30
      %p39 = scmp.eq.s32.totalorder %s22, 1
      %p40 = por %p38, %p39
      %p41 = scmp.ne.s32.totalorder %s30, %s31
      %p42 = scmp.eq.s32.totalorder %s22, 0
      %p43 = por %p41, %p42
      %p44 = scmp.ne.s32.totalorder %s30, %s31
      %p45 = scmp.eq.s32.totalorder %s23, 1
      %p46 = por %p44, %p45
      %p48 = scmp.ne.s32.totalorder %s31, %s47
      %p49 = scmp.eq.s32.totalorder %s23, 0
      %p50 = por %p48, %p49
      %s51 = ssub.s32 %s17, %s24
      %p52 = scmp.eq.s32.totalorder %s51, 0
      %s54 = sadd.s32 %s53, 1
      %s55 = scalar_select %p52, %s53, %s54
      %p58 = pneg %p52
      %p59 = scmp.eq.s32.totalorder %s17, 1
      %p60 = por %p58, %p59
      %p61 = scmp.ne.s32.totalorder %s53, %s56
      %p62 = scmp.eq.s32.totalorder %s17, 0
      %p63 = por %p61, %p62
      %p64 = scmp.ne.s32.totalorder %s53, %s56
      %p65 = scmp.eq.s32.totalorder %s22, 1
      %p66 = por %p64, %p65
      %p67 = scmp.ne.s32.totalorder %s56, %s57
      %p68 = scmp.eq.s32.totalorder %s22, 0
      %p69 = por %p67, %p68
      %p70 = scmp.ne.s32.totalorder %s56, %s57
      %p71 = scmp.eq.s32.totalorder %s23, 1
      %p72 = por %p70, %p71
      %p74 = scmp.ne.s32.totalorder %s57, %s73
      %p75 = scmp.eq.s32.totalorder %s23, 0
      %p76 = por %p74, %p75
      %s77 = ssub.s32 %s17, %s24
      %p78 = scmp.eq.s32.totalorder %s77, 0
      %s80 = sadd.s32 %s79, 1
      %s81 = scalar_select %p78, %s79, %s80
      %p84 = pneg %p78
      %p85 = scmp.eq.s32.totalorder %s17, 1
      %p86 = por %p84, %p85
      %p87 = scmp.ne.s32.totalorder %s79, %s82
      %p88 = scmp.eq.s32.totalorder %s17, 0
      %p89 = por %p87, %p88
      %p90 = scmp.ne.s32.totalorder %s79, %s82
      %p91 = scmp.eq.s32.totalorder %s22, 1
      %p92 = por %p90, %p91
      %p93 = scmp.ne.s32.totalorder %s82, %s83
      %p94 = scmp.eq.s32.totalorder %s22, 0
      %p95 = por %p93, %p94
      %p96 = scmp.ne.s32.totalorder %s82, %s83
      %p97 = scmp.eq.s32.totalorder %s23, 1
      %p98 = por %p96, %p97
      %p100 = scmp.ne.s32.totalorder %s83, %s99
      %p101 = scmp.eq.s32.totalorder %s23, 0
      %p102 = por %p100, %p101
      %s103 = ssub.s32 %s17, %s24
      %p104 = scmp.eq.s32.totalorder %s103, 0
      %s106 = sadd.s32 %s105, 1
      %s107 = scalar_select %p104, %s105, %s106
      %p110 = pneg %p104
      %p111 = scmp.eq.s32.totalorder %s17, 1
      %p112 = por %p110, %p111
      %p113 = scmp.ne.s32.totalorder %s105, %s108
      %p114 = scmp.eq.s32.totalorder %s17, 0
      %p115 = por %p113, %p114
      %p116 = scmp.ne.s32.totalorder %s105, %s108
      %p117 = scmp.eq.s32.totalorder %s22, 1
      %p118 = por %p116, %p117
      %p119 = scmp.ne.s32.totalorder %s108, %s109
      %p120 = scmp.eq.s32.totalorder %s22, 0
      %p121 = por %p119, %p120
      %p122 = scmp.ne.s32.totalorder %s108, %s109
      %p123 = scmp.eq.s32.totalorder %s23, 1
      %p124 = por %p122, %p123
      %p126 = scmp.ne.s32.totalorder %s109, %s125
      %p127 = scmp.eq.s32.totalorder %s23, 0
      %p128 = por %p126, %p127
      %s129 = ssub.s32 %s17, %s24
      %p130 = scmp.eq.s32.totalorder %s129, 0
      %s132 = sadd.s32 %s131, 1
      %s133 = scalar_select %p130, %s131, %s132
      %p136 = pneg %p130
      %p137 = scmp.eq.s32.totalorder %s17, 1
      %p138 = por %p136, %p137
      %p139 = scmp.ne.s32.totalorder %s131, %s134
      %p140 = scmp.eq.s32.totalorder %s17, 0
      %p141 = por %p139, %p140
      %p142 = scmp.ne.s32.totalorder %s131, %s134
      %p143 = scmp.eq.s32.totalorder %s22, 1
      %p144 = por %p142, %p143
      %p145 = scmp.ne.s32.totalorder %s134, %s135
      %p146 = scmp.eq.s32.totalorder %s22, 0
      %p147 = por %p145, %p146
      %p148 = scmp.ne.s32.totalorder %s134, %s135
      %p149 = scmp.eq.s32.totalorder %s23, 1
      %p150 = por %p148, %p149
      %p152 = scmp.ne.s32.totalorder %s135, %s151
      %p153 = scmp.eq.s32.totalorder %s23, 0
      %p154 = por %p152, %p153
      %s155 = ssub.s32 %s17, %s24
      %p156 = scmp.eq.s32.totalorder %s155, 0
      %s158 = sadd.s32 %s157, 1
      %s159 = scalar_select %p156, %s157, %s158
      %p162 = pneg %p156
      %p163 = scmp.eq.s32.totalorder %s17, 1
      %p164 = por %p162, %p163
      %p165 = scmp.ne.s32.totalorder %s157, %s160
      %p166 = scmp.eq.s32.totalorder %s17, 0
      %p167 = por %p165, %p166
      %p168 = scmp.ne.s32.totalorder %s157, %s160
      %p169 = scmp.eq.s32.totalorder %s22, 1
      %p170 = por %p168, %p169
      %p171 = scmp.ne.s32.totalorder %s160, %s161
      %p172 = scmp.eq.s32.totalorder %s22, 0
      %p173 = por %p171, %p172
      %p174 = scmp.ne.s32.totalorder %s160, %s161
      %p175 = scmp.eq.s32.totalorder %s23, 1
      %p176 = por %p174, %p175
      %p178 = scmp.ne.s32.totalorder %s161, %s177
      %p179 = scmp.eq.s32.totalorder %s23, 0
      %p180 = por %p178, %p179
      %p181 = scmp.le.s32.totalorder 1, %s17
      %p182 = scmp.lt.s32.totalorder %s17, 3
      %p183 = pnand %p181, %p182
      %p184 = pneg %p183
      // Predicated region
      $region9: #{tpu_custom_call.1} parent=5 // pred_check
        _
      $region10: #{tpu_custom_call.1} parent=5 // pred_check_branch
        %186 = sbr.rel (%p183) target = $region12
      $region11: #{tpu_custom_call.1} parent=5 // pred_region
        %s187 = ssub.s32 %s17, 1
      $region12: #{tpu_custom_call.1} parent=5 // pred_fallthru
        _
      %p188 = scmp.lt.s32.totalorder %s17, 2
      // Predicated region
      $region13: #{tpu_custom_call.1} parent=5 // pred_check
        %p189 = pneg %p188
      $region14: #{tpu_custom_call.1} parent=5 // pred_check_branch
        %191 = sbr.rel (%p189) target = $region16
      $region15: #{tpu_custom_call.1} parent=5 // pred_region
        // Predicated region
        $region17: #{tpu_custom_call.1} parent=15 // pred_check
          %p192 = pneg %p37
        $region18: #{tpu_custom_call.1} parent=15 // pred_check_branch
          %194 = sbr.rel (%p192) target = $region20
        $region19: #{tpu_custom_call.1} parent=15 // pred_region
          %p195 = scmp.lt.s32.totalorder %s17, 1
          %s196 = scalar_select %p195, %s17, 1
          %s197 = smul.addr %s196, 2
          %s198 = smul.addr %s197, 4
          %s199 = scalar_lea.vmem %s0, %s198
        $region20: #{tpu_custom_call.1} parent=15 // pred_fallthru
          _
        // Predicated region
        $region21: #{tpu_custom_call.1} parent=15 // pred_check
          %p200 = pneg %p63
        $region22: #{tpu_custom_call.1} parent=15 // pred_check_branch
          %202 = sbr.rel (%p200) target = $region24
        $region23: #{tpu_custom_call.1} parent=15 // pred_region
          %p203 = scmp.lt.s32.totalorder %s17, 1
          %s204 = scalar_select %p203, %s17, 1
          %s205 = smul.addr %s204, 2
          %s206 = smul.addr %s205, 4
          %s207 = scalar_lea.vmem %s1, %s206
        $region24: #{tpu_custom_call.1} parent=15 // pred_fallthru
          _
        // Predicated region
        $region25: #{tpu_custom_call.1} parent=15 // pred_check
          %p208 = pneg %p89
        $region26: #{tpu_custom_call.1} parent=15 // pred_check_branch
          %210 = sbr.rel (%p208) target = $region28
        $region27: #{tpu_custom_call.1} parent=15 // pred_region
          %s211 = sand.u32 %s79, 1
          %s212 = scalar_lea.sflag [#allocation4], %s211
          %s213 = sand.u32 %s79, 1
          %s214 = smul.addr %s213, 132
          %s215 = scalar_lea.vmem [#allocation3], %s214
          %s217 = ssub.s32 2112, 2112
          %218 = vsyncadd %s212, %s217
          %s219 = smul.addr %s17, 33
          %s220 = smul.addr %s219, 64
          %s221 = scalar_lea.hbm %s2, %s220
          %s222 = sshll.u32 %s215, 4
          %s223 = int_to_ptr.vmem [resolvable:$true] %s222
          %228 = dma.hbm_to_vmem [thread:$0]  %s221, 2112, %s223, %s212, 64, 64, 4
        $region28: #{tpu_custom_call.1} parent=15 // pred_fallthru
          _
        // Predicated region
        $region29: #{tpu_custom_call.1} parent=15 // pred_check
          %p229 = pneg %p115
        $region30: #{tpu_custom_call.1} parent=15 // pred_check_branch
          %231 = sbr.rel (%p229) target = $region32
        $region31: #{tpu_custom_call.1} parent=15 // pred_region
          %p232 = scmp.lt.s32.totalorder %s17, 1
          %s233 = scalar_select %p232, %s17, 1
          %s234 = smul.addr %s233, 8
          %s235 = scalar_lea.vmem %s3, %s234
        $region32: #{tpu_custom_call.1} parent=15 // pred_fallthru
          _
        // Predicated region
        $region33: #{tpu_custom_call.1} parent=15 // pred_check
          %p236 = pneg %p141
        $region34: #{tpu_custom_call.1} parent=15 // pred_check_branch
          %238 = sbr.rel (%p236) target = $region36
        $region35: #{tpu_custom_call.1} parent=15 // pred_region
          %p239 = scmp.lt.s32.totalorder %s17, 1
          %s240 = scalar_select %p239, %s17, 1
          %s241 = smul.addr %s240, 2
          %s242 = smul.addr %s241, 8
          %s243 = scalar_lea.vmem %s4, %s242
        $region36: #{tpu_custom_call.1} parent=15 // pred_fallthru
          _
      $region16: #{tpu_custom_call.1} parent=5 // pred_fallthru
        _
      %p244 = scmp.le.s32.totalorder 1, %s17
      %p245 = scmp.lt.s32.totalorder %s17, 3
      %p246 = pnand %p244, %p245
      %p247 = pneg %p246
      // Predicated region
      $region37: #{tpu_custom_call.1} parent=5 // pred_check
        _
      $region38: #{tpu_custom_call.1} parent=5 // pred_check_branch
        %249 = sbr.rel (%p246) target = $region40
      $region39: #{tpu_custom_call.1} parent=5 // pred_region
        %s250 = ssub.s32 %s17, 1
        %s251 = sand.u32 %s82, 1
        %s252 = scalar_lea.sflag [#allocation4], %s251
        %s253 = sand.u32 %s82, 1
        %s254 = smul.addr %s253, 132
        %s255 = scalar_lea.vmem [#allocation3], %s254
        // Predicated region
        $region41: #{tpu_custom_call.1} parent=39 // pred_check
          %p256 = pneg %p95
        $region42: #{tpu_custom_call.1} parent=39 // pred_check_branch
          %258 = sbr.rel (%p256) target = $region44
        $region43: #{tpu_custom_call.1} parent=39 // pred_region
          %259 = dma.done %s252, 2112
        $region44: #{tpu_custom_call.1} parent=39 // pred_fallthru
          _
        %p260 = scmp.lt.s32.totalorder %s22, 1
        %s261 = scalar_select %p260, %s22, 1
        %s262 = smul.addr %s261, 2
        %s263 = smul.addr %s262, 4
        %s264 = scalar_lea.vmem %s0, %s263
        %p265 = pneg %p43
        %p266 = pneg %p40
        %p267 = scmp.lt.s32.totalorder %s22, 1
        %s268 = scalar_select %p267, %s22, 1
        %s269 = smul.addr %s268, 2
        %s270 = smul.addr %s269, 4
        %s271 = scalar_lea.vmem %s1, %s270
        %p272 = pneg %p69
        %p273 = pneg %p66
        %s274 = sand.u32 %s82, 1
        %s275 = scalar_lea.sflag [#allocation4], %s274
        %s276 = sand.u32 %s82, 1
        %s277 = smul.addr %s276, 132
        %s278 = scalar_lea.vmem [#allocation3], %s277
        %p279 = pneg %p95
        %p280 = pneg %p92
        %p281 = scmp.lt.s32.totalorder %s22, 1
        %s282 = scalar_select %p281, %s22, 1
        %s283 = smul.addr %s282, 8
        %s284 = scalar_lea.vmem %s3, %s283
        %p285 = pneg %p121
        %p286 = pneg %p118
        %p287 = scmp.lt.s32.totalorder %s22, 1
        %s288 = scalar_select %p287, %s22, 1
        %s289 = smul.addr %s288, 2
        %s290 = smul.addr %s289, 8
        %s291 = scalar_lea.vmem %s4, %s290
        %p292 = pneg %p147
        %p293 = pneg %p144
        %p294 = pneg %p173
        %p295 = pneg %p170
        %s296 = sand.u32 %s160, 1
        %s297 = scalar_lea.sflag [#allocation5], %s296
        %s298 = sand.u32 %s160, 1
        %s299 = smul.addr %s298, 16
        %s300 = scalar_lea.vmem [#allocation6], %s299
        %p301 = scmp.lt.s32.totalorder %s22, 1
        %s302 = scalar_select %p301, %s22, 1
        %s303 = smul.addr %s302, 2
        %s304 = smul.addr %s303, 4
        %s305 = scalar_lea.vmem %s0, %s304
        %p306 = scmp.lt.s32.totalorder %s22, 1
        %s307 = scalar_select %p306, %s22, 1
        %s308 = smul.addr %s307, 2
        %s309 = smul.addr %s308, 4
        %s310 = scalar_lea.vmem %s1, %s309
        %p311 = scmp.lt.s32.totalorder %s22, 1
        %s312 = scalar_select %p311, %s22, 1
        %s313 = smul.addr %s312, 8
        %s314 = scalar_lea.vmem %s3, %s313
        %p315 = scmp.lt.s32.totalorder %s22, 1
        %s316 = scalar_select %p315, %s22, 1
        %s317 = smul.addr %s316, 2
        %s318 = smul.addr %s317, 8
        %s319 = scalar_lea.vmem %s4, %s318
        %v321 = vld [vmem:[%s305] sm:$0xf]
        %v322 = vld [vmem:[%s305 + $0x4] sm:$0xf]
        %v323 = vld [vmem:[%s255] sm:$0xf]
        %v324 = vld [vmem:[%s255 + $0x4] sm:$0xf]
        %v325 = vld [vmem:[%s255 + $0x8] sm:$0xf]
        %v326 = vld [vmem:[%s255 + $0xc] sm:$0xf]
        %v327 = vld [vmem:[%s255 + $0x10] sm:$0xf]
        %v328 = vld [vmem:[%s255 + $0x14] sm:$0xf]
        %v329 = vld [vmem:[%s255 + $0x18] sm:$0xf]
        %v330 = vld [vmem:[%s255 + $0x1c] sm:$0xf]
        %v331 = vld [vmem:[%s255 + $0x20] sm:$0xf]
        %v332 = vld [vmem:[%s255 + $0x24] sm:$0xf]
        %v333 = vld [vmem:[%s255 + $0x28] sm:$0xf]
        %v334 = vld [vmem:[%s255 + $0x2c] sm:$0xf]
        %v335 = vld [vmem:[%s255 + $0x30] sm:$0xf]
        %v336 = vld [vmem:[%s255 + $0x34] sm:$0xf]
        %v337 = vld [vmem:[%s255 + $0x38] sm:$0xf]
        %v338 = vld [vmem:[%s255 + $0x3c] sm:$0xf]
        %v339 = vld [vmem:[%s255 + $0x40] sm:$0xf]
        %v340 = vld [vmem:[%s255 + $0x44] sm:$0xf]
        %v341 = vld [vmem:[%s255 + $0x48] sm:$0xf]
        %v342 = vld [vmem:[%s255 + $0x4c] sm:$0xf]
        %v343 = vld [vmem:[%s255 + $0x50] sm:$0xf]
        %v344 = vld [vmem:[%s255 + $0x54] sm:$0xf]
        %v345 = vld [vmem:[%s255 + $0x58] sm:$0xf]
        %v346 = vld [vmem:[%s255 + $0x5c] sm:$0xf]
        %v347 = vld [vmem:[%s255 + $0x60] sm:$0xf]
        %v348 = vld [vmem:[%s255 + $0x64] sm:$0xf]
        %v349 = vld [vmem:[%s255 + $0x68] sm:$0xf]
        %v350 = vld [vmem:[%s255 + $0x6c] sm:$0xf]
        %v351 = vld [vmem:[%s255 + $0x70] sm:$0xf]
        %v352 = vld [vmem:[%s255 + $0x74] sm:$0xf]
        %v353 = vld [vmem:[%s255 + $0x78] sm:$0xf]
        %v354 = vld [vmem:[%s255 + $0x7c] sm:$0xf]
        %v355 = vld [vmem:[%s255 + $0x80] sm:$0xf]
        %v356 = vunpack.c.l.bf16 %v355
        %v359 = vunpack.c.l.b16 %v321
        %v360 = vunpack.c.l.b16 %v322
        %v361 = vpack.c.b16 %v360, %v359
        %v379 = vunpack.c.l.b16 %v323
        %v380 = vunpack.c.l.b16 %v324
        %v381 = vunpack.c.l.b16 %v325
        %v382 = vunpack.c.l.b16 %v326
        %v383 = vunpack.c.l.b16 %v327
        %v384 = vunpack.c.l.b16 %v328
        %v385 = vunpack.c.l.b16 %v329
        %v386 = vunpack.c.l.b16 %v330
        %v387 = vunpack.c.l.b16 %v331
        %v388 = vunpack.c.l.b16 %v332
        %v389 = vunpack.c.l.b16 %v333
        %v390 = vunpack.c.l.b16 %v334
        %v391 = vunpack.c.l.b16 %v335
        %v392 = vunpack.c.l.b16 %v336
        %v393 = vunpack.c.l.b16 %v337
        %v394 = vunpack.c.l.b16 %v338
        %v395 = vpack.c.b16 %v380, %v379
        %v396 = vpack.c.b16 %v382, %v381
        %v397 = vpack.c.b16 %v384, %v383
        %v398 = vpack.c.b16 %v386, %v385
        %v399 = vpack.c.b16 %v388, %v387
        %v400 = vpack.c.b16 %v390, %v389
        %v401 = vpack.c.b16 %v392, %v391
        %v402 = vpack.c.b16 %v394, %v393
        %411 = vmatprep.subr.bf16.mxu0 0
        %412 = vmatpush1.bf16.msra.mxu0 %v395
        %413 = vmatprep.subr.bf16.mxu0 0
        %414 = vmatpush1.bf16.msra.mxu0 %v396
        %415 = vmatprep.subr.bf16.mxu0 0
        %416 = vmatpush1.bf16.msra.mxu0 %v397
        %417 = vmatprep.subr.bf16.mxu0 0
        %418 = vmatpush1.bf16.msra.mxu0 %v398
        %419 = vmatprep.subr.bf16.mxu0 0
        %420 = vmatpush1.bf16.msra.mxu0 %v399
        %421 = vmatprep.subr.bf16.mxu0 0
        %422 = vmatpush1.bf16.msra.mxu0 %v400
        %423 = vmatprep.subr.bf16.mxu0 0
        %424 = vmatpush1.bf16.msra.mxu0 %v401
        %425 = vmatprep.subr.bf16.mxu0 0
        %426 = vmatpush1.bf16.msra.mxu0 %v402
        %427 = vmatprep.subr.bf16.mxu0 0
        %428 = vmatpush1.bf16.msra.mxu0 0
        %429 = vmatprep.subr.bf16.mxu0 0
        %430 = vmatpush1.bf16.msra.mxu0 0
        %431 = vmatprep.subr.bf16.mxu0 0
        %432 = vmatpush1.bf16.msra.mxu0 0
        %433 = vmatprep.subr.bf16.mxu0 0
        %434 = vmatpush1.bf16.msra.mxu0 0
        %435 = vmatprep.subr.bf16.mxu0 0
        %436 = vmatpush1.bf16.msra.mxu0 0
        %437 = vmatprep.subr.bf16.mxu0 0
        %438 = vmatpush1.bf16.msra.mxu0 0
        %439 = vmatprep.subr.bf16.mxu0 0
        %440 = vmatpush1.bf16.msra.mxu0 0
        %441 = vmatprep.subr.bf16.mxu0 0
        %442 = vmatpush1.bf16.msra.mxu0 0
        %443 = vmatprep.mubr.bf16.mxu0 0
        %444 = vmatmul.mubr.bf16.gmra.mrb[0].mxu0 %v361
        %v445 = vpop.f32.mrb[0].mxu0
        %v446 = vadd.f32 0.0, %v445
        %v447 = vpop.f32.mrb[0].mxu0
        %v448 = vpop.f32.mrb[0].mxu0
        %v449 = vadd.f32 0.0, %v448
        %v450 = vpop.f32.mrb[0].mxu0
        %451 = vdwg.mxu0
        %v452 = vld [vmem:[%s310] sm:$0xf]
        %v453 = vld [vmem:[%s310 + $0x4] sm:$0xf]
        %v454 = vpack.c.bf16 %v449, %v446
        %v455 = vlaneseq
        %v456 = vshrl.u32 %v455, 7
        %v457 = vsub.s32 0, %v456
        %v458 = vrot.slane %v356, %v457
        %v461 = vunpack.c.l.b16 %v452
        %v462 = vunpack.c.l.b16 %v453
        %v463 = vpack.c.b16 %v462, %v461
        %vm464 = vcmask 130048
        %v466 = vsel %vm464, %v463, 0
        %468 = vmatprep.subr.bf16.mxu0 0
        %469 = vmatpush1.bf16.msra.mxu0 %v454
        %470 = vmatprep.subr.bf16.mxu0 0
        %471 = vmatpush1.bf16.msra.mxu0 0
        %472 = vmatprep.subr.bf16.mxu0 0
        %473 = vmatpush1.bf16.msra.mxu0 0
        %474 = vmatprep.subr.bf16.mxu0 0
        %475 = vmatpush1.bf16.msra.mxu0 0
        %476 = vmatprep.subr.bf16.mxu0 0
        %477 = vmatpush1.bf16.msra.mxu0 0
        %478 = vmatprep.subr.bf16.mxu0 0
        %479 = vmatpush1.bf16.msra.mxu0 0
        %480 = vmatprep.subr.bf16.mxu0 0
        %481 = vmatpush1.bf16.msra.mxu0 0
        %482 = vmatprep.subr.bf16.mxu0 0
        %483 = vmatpush1.bf16.msra.mxu0 0
        %484 = vmatprep.subr.bf16.mxu0 0
        %485 = vmatpush1.bf16.msra.mxu0 0
        %486 = vmatprep.subr.bf16.mxu0 0
        %487 = vmatpush1.bf16.msra.mxu0 0
        %488 = vmatprep.subr.bf16.mxu0 0
        %489 = vmatpush1.bf16.msra.mxu0 0
        %490 = vmatprep.subr.bf16.mxu0 0
        %491 = vmatpush1.bf16.msra.mxu0 0
        %492 = vmatprep.subr.bf16.mxu0 0
        %493 = vmatpush1.bf16.msra.mxu0 0
        %494 = vmatprep.subr.bf16.mxu0 0
        %495 = vmatpush1.bf16.msra.mxu0 0
        %496 = vmatprep.subr.bf16.mxu0 0
        %497 = vmatpush1.bf16.msra.mxu0 0
        %498 = vmatprep.subr.bf16.mxu0 0
        %499 = vmatpush1.bf16.msra.mxu0 0
        %500 = vmatprep.mubr.bf16.mxu0 0
        %501 = vmatmul.mubr.bf16.gmra.mrb[0].mxu0 %v466
        %v502 = vpop.f32.mrb[0].mxu0
        %v503 = vadd.f32 %v458, %v502
        %v504 = vpop.f32.mrb[0].mxu0
        %v505 = vpop.f32.mrb[0].mxu0
        %v506 = vadd.f32 %v458, %v505
        %v507 = vpop.f32.mrb[0].mxu0
        %508 = vdwg.mxu0
        %v509 = vmax.f32 %v503, 0.0
        %v510 = vmax.f32 %v506, 0.0
        %v511 = vpack.c.bf16 %v510, %v509
        %v512 = vlaneseq
        %v513 = vshrl.u32 %v512, 7
        %v514 = vsub.s32 1, %v513
        %v515 = vrot.slane %v356, %v514
        %v532 = vunpack.c.l.b16 %v339
        %v533 = vunpack.c.l.b16 %v340
        %v534 = vunpack.c.l.b16 %v341
        %v535 = vunpack.c.l.b16 %v342
        %v536 = vunpack.c.l.b16 %v343
        %v537 = vunpack.c.l.b16 %v344
        %v538 = vunpack.c.l.b16 %v345
        %v539 = vunpack.c.l.b16 %v346
        %v540 = vunpack.c.l.b16 %v347
        %v541 = vunpack.c.l.b16 %v348
        %v542 = vunpack.c.l.b16 %v349
        %v543 = vunpack.c.l.b16 %v350
        %v544 = vunpack.c.l.b16 %v351
        %v545 = vunpack.c.l.b16 %v352
        %v546 = vunpack.c.l.b16 %v353
        %v547 = vunpack.c.l.b16 %v354
        %v548 = vpack.c.b16 %v533, %v532
        %v549 = vpack.c.b16 %v535, %v534
        %v550 = vpack.c.b16 %v537, %v536
        %v551 = vpack.c.b16 %v539, %v538
        %v552 = vpack.c.b16 %v541, %v540
        %v553 = vpack.c.b16 %v543, %v542
        %v554 = vpack.c.b16 %v545, %v544
        %v555 = vpack.c.b16 %v547, %v546
        %564 = vmatprep.subr.bf16.mxu0 0
        %565 = vmatpush1.bf16.msra.mxu0 %v548
        %566 = vmatprep.subr.bf16.mxu0 0
        %567 = vmatpush1.bf16.msra.mxu0 %v549
        %568 = vmatprep.subr.bf16.mxu0 0
        %569 = vmatpush1.bf16.msra.mxu0 %v550
        %570 = vmatprep.subr.bf16.mxu0 0
        %571 = vmatpush1.bf16.msra.mxu0 %v551
        %572 = vmatprep.subr.bf16.mxu0 0
        %573 = vmatpush1.bf16.msra.mxu0 %v552
        %574 = vmatprep.subr.bf16.mxu0 0
        %575 = vmatpush1.bf16.msra.mxu0 %v553
        %576 = vmatprep.subr.bf16.mxu0 0
        %577 = vmatpush1.bf16.msra.mxu0 %v554
        %578 = vmatprep.subr.bf16.mxu0 0
        %579 = vmatpush1.bf16.msra.mxu0 %v555
        %580 = vmatprep.subr.bf16.mxu0 0
        %581 = vmatpush1.bf16.msra.mxu0 0
        %582 = vmatprep.subr.bf16.mxu0 0
        %583 = vmatpush1.bf16.msra.mxu0 0
        %584 = vmatprep.subr.bf16.mxu0 0
        %585 = vmatpush1.bf16.msra.mxu0 0
        %586 = vmatprep.subr.bf16.mxu0 0
        %587 = vmatpush1.bf16.msra.mxu0 0
        %588 = vmatprep.subr.bf16.mxu0 0
        %589 = vmatpush1.bf16.msra.mxu0 0
        %590 = vmatprep.subr.bf16.mxu0 0
        %591 = vmatpush1.bf16.msra.mxu0 0
        %592 = vmatprep.subr.bf16.mxu0 0
        %593 = vmatpush1.bf16.msra.mxu0 0
        %594 = vmatprep.subr.bf16.mxu0 0
        %595 = vmatpush1.bf16.msra.mxu0 0
        %596 = vmatprep.mubr.bf16.mxu0 0
        %597 = vmatmul.mubr.bf16.gmra.mrb[0].mxu0 %v511
        %v598 = vpop.f32.mrb[0].mxu0
        %v599 = vadd.f32 %v515, %v598
        %v600 = vpop.f32.mrb[0].mxu0
        %v601 = vpop.f32.mrb[0].mxu0
        %v602 = vadd.f32 %v515, %v601
        %v603 = vpop.f32.mrb[0].mxu0
        %604 = vdwg.mxu0
        %v605 = vld [vmem:[%s314] sm:$0xff]
        %v607 = vsel %vm464, %v605, 0
        %609 = vmatprep.subr.mxu0 0.0
        %610 = vmatpush1.msra.mxu0 %v599
        %611 = vmatprep.subr.mxu0 0.0
        %612 = vmatpush1.msra.mxu0 %v602
        %613 = vmatprep.subr.mxu0 0.0
        %614 = vmatpush1.msra.mxu0 0.0
        %615 = vmatprep.subr.mxu0 0.0
        %616 = vmatpush1.msra.mxu0 0.0
        %617 = vmatprep.subr.mxu0 0.0
        %618 = vmatpush1.msra.mxu0 0.0
        %619 = vmatprep.subr.mxu0 0.0
        %620 = vmatpush1.msra.mxu0 0.0
        %621 = vmatprep.subr.mxu0 0.0
        %622 = vmatpush1.msra.mxu0 0.0
        %623 = vmatprep.subr.mxu0 0.0
        %624 = vmatpush1.msra.mxu0 0.0
        %625 = vmatprep.subr.mxu0 0.0
        %626 = vmatpush1.msra.mxu0 0.0
        %627 = vmatprep.subr.mxu0 0.0
        %628 = vmatpush1.msra.mxu0 0.0
        %629 = vmatprep.subr.mxu0 0.0
        %630 = vmatpush1.msra.mxu0 0.0
        %631 = vmatprep.subr.mxu0 0.0
        %632 = vmatpush1.msra.mxu0 0.0
        %633 = vmatprep.subr.mxu0 0.0
        %634 = vmatpush1.msra.mxu0 0.0
        %635 = vmatprep.subr.mxu0 0.0
        %636 = vmatpush1.msra.mxu0 0.0
        %637 = vmatprep.subr.mxu0 0.0
        %638 = vmatpush1.msra.mxu0 0.0
        %639 = vmatprep.subr.mxu0 0.0
        %640 = vmatpush1.msra.mxu0 0.0
        %641 = vmatprep.subr.mxu0 0.0
        %642 = vmatpush1.msra.mxu0 0.0
        %643 = vmatprep.subr.mxu0 0.0
        %644 = vmatpush1.msra.mxu0 0.0
        %645 = vmatprep.subr.mxu0 0.0
        %646 = vmatpush1.msra.mxu0 0.0
        %647 = vmatprep.subr.mxu0 0.0
        %648 = vmatpush1.msra.mxu0 0.0
        %649 = vmatprep.subr.mxu0 0.0
        %650 = vmatpush1.msra.mxu0 0.0
        %651 = vmatprep.subr.mxu0 0.0
        %652 = vmatpush1.msra.mxu0 0.0
        %653 = vmatprep.subr.mxu0 0.0
        %654 = vmatpush1.msra.mxu0 0.0
        %655 = vmatprep.subr.mxu0 0.0
        %656 = vmatpush1.msra.mxu0 0.0
        %657 = vmatprep.subr.mxu0 0.0
        %658 = vmatpush1.msra.mxu0 0.0
        %659 = vmatprep.subr.mxu0 0.0
        %660 = vmatpush1.msra.mxu0 0.0
        %661 = vmatprep.subr.mxu0 0.0
        %662 = vmatpush1.msra.mxu0 0.0
        %663 = vmatprep.subr.mxu0 0.0
        %664 = vmatpush1.msra.mxu0 0.0
        %665 = vmatprep.subr.mxu0 0.0
        %666 = vmatpush1.msra.mxu0 0.0
        %667 = vmatprep.subr.mxu0 0.0
        %668 = vmatpush1.msra.mxu0 0.0
        %669 = vmatprep.subr.mxu0 0.0
        %670 = vmatpush1.msra.mxu0 0.0
        %671 = vmatprep.subr.mxu0 0.0
        %672 = vmatpush1.msra.mxu0 0.0
        %673 = vmatprep.mubr.f32.mxu0 0.0
        %674 = vmatmul.mubr.f32.gmra.mrb[0].mxu0 %v607
        %v675 = vpop.f32.mrb[0].mxu0
        %v676 = vadd.f32 0.0, %v675
        %v677 = vpop.f32.mrb[0].mxu0
        %678 = vdwg.mxu0
        %v679 = vld [vmem:[%s319] sm:$0xff]
        %v680 = vld [vmem:[%s319 + $0x8] sm:$0xff]
        %682 = vset.pattern.permute.xlu0 0
        %683 = vperm.xlu0 %682, %v679
        %v684 = vpop.permute.xlu0 %683
        %687 = vset.pattern.permute.xlu0 0
        %688 = vperm.xlu0 %687, %v680
        %v689 = vpop.permute.xlu0 %688
        %v691 = vadd.f32 %v599, %v684
        %v692 = vadd.f32 %v602, %v689
        %v693 = vmax.f32 %v691, %v692
        %v694 = vrot.slane %v693, 4
        %v695 = vmax.f32 %v693, %v694
        %v696 = vrot.slane %v695, 2
        %v697 = vmax.f32 %v695, %v696
        %v698 = vrot.slane %v697, 1
        %v699 = vmax.f32 %v697, %v698
        %700 = vst [vmem:[#allocation2] sm:$0x1] %v699
        %v701 = vld [vmem:[%s319] sm:$0xff]
        %v702 = vld [vmem:[%s319 + $0x8] sm:$0xff]
        %704 = vset.pattern.permute.xlu0 1
        %705 = vperm.xlu0 %704, %v701
        %v706 = vpop.permute.xlu0 %705
        %709 = vset.pattern.permute.xlu0 1
        %710 = vperm.xlu0 %709, %v702
        %v711 = vpop.permute.xlu0 %710
        %v713 = vadd.f32 %v599, %v706
        %v714 = vadd.f32 %v602, %v711
        %v715 = vmax.f32 %v713, %v714
        %v716 = vrot.slane %v715, 4
        %v717 = vmax.f32 %v715, %v716
        %v718 = vrot.slane %v717, 2
        %v719 = vmax.f32 %v717, %v718
        %v720 = vrot.slane %v719, 1
        %v721 = vmax.f32 %v719, %v720
        %722 = vst [vmem:[#allocation2 + $0x1] sm:$0x1] %v721
        %v723 = vld [vmem:[%s319] sm:$0xff]
        %v724 = vld [vmem:[%s319 + $0x8] sm:$0xff]
        %726 = vset.pattern.permute.xlu0 2
        %727 = vperm.xlu0 %726, %v723
        %v728 = vpop.permute.xlu0 %727
        %731 = vset.pattern.permute.xlu0 2
        %732 = vperm.xlu0 %731, %v724
        %v733 = vpop.permute.xlu0 %732
        %v735 = vadd.f32 %v599, %v728
        %v736 = vadd.f32 %v602, %v733
        %v737 = vmax.f32 %v735, %v736
        %v738 = vrot.slane %v737, 4
        %v739 = vmax.f32 %v737, %v738
        %v740 = vrot.slane %v739, 2
        %v741 = vmax.f32 %v739, %v740
        %v742 = vrot.slane %v741, 1
        %v743 = vmax.f32 %v741, %v742
        %744 = vst [vmem:[#allocation2 + $0x2] sm:$0x1] %v743
        %v745 = vld [vmem:[%s319] sm:$0xff]
        %v746 = vld [vmem:[%s319 + $0x8] sm:$0xff]
        %748 = vset.pattern.permute.xlu0 3
        %749 = vperm.xlu0 %748, %v745
        %v750 = vpop.permute.xlu0 %749
        %753 = vset.pattern.permute.xlu0 3
        %754 = vperm.xlu0 %753, %v746
        %v755 = vpop.permute.xlu0 %754
        %v757 = vadd.f32 %v599, %v750
        %v758 = vadd.f32 %v602, %v755
        %v759 = vmax.f32 %v757, %v758
        %v760 = vrot.slane %v759, 4
        %v761 = vmax.f32 %v759, %v760
        %v762 = vrot.slane %v761, 2
        %v763 = vmax.f32 %v761, %v762
        %v764 = vrot.slane %v763, 1
        %v765 = vmax.f32 %v763, %v764
        %766 = vst [vmem:[#allocation2 + $0x3] sm:$0x1] %v765
        %v767 = vld [vmem:[%s319] sm:$0xff]
        %v768 = vld [vmem:[%s319 + $0x8] sm:$0xff]
        %770 = vset.pattern.permute.xlu0 4
        %771 = vperm.xlu0 %770, %v767
        %v772 = vpop.permute.xlu0 %771
        %775 = vset.pattern.permute.xlu0 4
        %776 = vperm.xlu0 %775, %v768
        %v777 = vpop.permute.xlu0 %776
        %v779 = vadd.f32 %v599, %v772
        %v780 = vadd.f32 %v602, %v777
        %v781 = vmax.f32 %v779, %v780
        %v782 = vrot.slane %v781, 4
        %v783 = vmax.f32 %v781, %v782
        %v784 = vrot.slane %v783, 2
        %v785 = vmax.f32 %v783, %v784
        %v786 = vrot.slane %v785, 1
        %v787 = vmax.f32 %v785, %v786
        %788 = vst [vmem:[#allocation2 + $0x4] sm:$0x1] %v787
        %v789 = vld [vmem:[%s319] sm:$0xff]
        %v790 = vld [vmem:[%s319 + $0x8] sm:$0xff]
        %792 = vset.pattern.permute.xlu0 5
        %793 = vperm.xlu0 %792, %v789
        %v794 = vpop.permute.xlu0 %793
        %797 = vset.pattern.permute.xlu0 5
        %798 = vperm.xlu0 %797, %v790
        %v799 = vpop.permute.xlu0 %798
        %v801 = vadd.f32 %v599, %v794
        %v802 = vadd.f32 %v602, %v799
        %v803 = vmax.f32 %v801, %v802
        %v804 = vrot.slane %v803, 4
        %v805 = vmax.f32 %v803, %v804
        %v806 = vrot.slane %v805, 2
        %v807 = vmax.f32 %v805, %v806
        %v808 = vrot.slane %v807, 1
        %v809 = vmax.f32 %v807, %v808
        %810 = vst [vmem:[#allocation2 + $0x5] sm:$0x1] %v809
        %v811 = vld [vmem:[%s319] sm:$0xff]
        %v812 = vld [vmem:[%s319 + $0x8] sm:$0xff]
        %814 = vset.pattern.permute.xlu0 6
        %815 = vperm.xlu0 %814, %v811
        %v816 = vpop.permute.xlu0 %815
        %819 = vset.pattern.permute.xlu0 6
        %820 = vperm.xlu0 %819, %v812
        %v821 = vpop.permute.xlu0 %820
        %v823 = vadd.f32 %v599, %v816
        %v824 = vadd.f32 %v602, %v821
        %v825 = vmax.f32 %v823, %v824
        %v826 = vrot.slane %v825, 4
        %v827 = vmax.f32 %v825, %v826
        %v828 = vrot.slane %v827, 2
        %v829 = vmax.f32 %v827, %v828
        %v830 = vrot.slane %v829, 1
        %v831 = vmax.f32 %v829, %v830
        %832 = vst [vmem:[#allocation2 + $0x6] sm:$0x1] %v831
        %v833 = vld [vmem:[%s319] sm:$0xff]
        %v834 = vld [vmem:[%s319 + $0x8] sm:$0xff]
        %836 = vset.pattern.permute.xlu0 7
        %837 = vperm.xlu0 %836, %v833
        %v838 = vpop.permute.xlu0 %837
        %841 = vset.pattern.permute.xlu0 7
        %842 = vperm.xlu0 %841, %v834
        %v843 = vpop.permute.xlu0 %842
        %v845 = vadd.f32 %v599, %v838
        %v846 = vadd.f32 %v602, %v843
        %v847 = vmax.f32 %v845, %v846
        %v848 = vrot.slane %v847, 4
        %v849 = vmax.f32 %v847, %v848
        %v850 = vrot.slane %v849, 2
        %v851 = vmax.f32 %v849, %v850
        %v852 = vrot.slane %v851, 1
        %v853 = vmax.f32 %v851, %v852
        %854 = vst [vmem:[#allocation2 + $0x7] sm:$0x1] %v853
        %v855 = vld [vmem:[#allocation2] sm:$0xff]
        %v856 = vmul.f32 %v676, %v676
        %857 = vadd.xlane.f32.xlu0 %v856
        %v858 = vpop.xlane.xlu0 %857
        %v859 = vmul.f32 %v855, %v855
        %860 = vadd.xlane.f32.xlu0 %v859
        %v861 = vpop.xlane.xlu0 %860
        %v862 = vadd.f32 %v858, %v861
        %v863 = vmax.f32 %v862, 1e-24
        %v864 = vrsqrt.pop %v863
        %v865 = vmul.f32 %v676, %v864
        %866 = vst [vmem:[%s300] sm:$0xff] %v865
        %v867 = vmul.f32 %v855, %v864
        %868 = vst [vmem:[%s300 + $0x8] sm:$0xff] %v867
        %s869 = sand.u32 %s160, 1
        %s870 = scalar_lea.sflag [#allocation5], %s869
        %s871 = sand.u32 %s160, 1
        %s872 = smul.addr %s871, 16
        %s873 = scalar_lea.vmem [#allocation6], %s872
        // Predicated region
        $region45: #{tpu_custom_call.1} parent=39 // pred_check
          %p874 = pneg %p170
        $region46: #{tpu_custom_call.1} parent=39 // pred_check_branch
          %876 = sbr.rel (%p874) target = $region48
        $region47: #{tpu_custom_call.1} parent=39 // pred_region
          %s878 = ssub.s32 256, 256
          %879 = vsyncadd %s870, %s878
          %s880 = smul.addr %s22, 2
          %s881 = smul.addr %s880, 128
          %s882 = scalar_lea.hbm %s5, %s881
          %s884 = sshll.u32 %s873, 4
          %s885 = int_to_ptr.vmem [resolvable:$true] %s884
          %887 = dma.vmem_to_hbm [thread:$0]  %s885, 256, %s882, %s870
        $region48: #{tpu_custom_call.1} parent=39 // pred_fallthru
          _
      $region40: #{tpu_custom_call.1} parent=5 // pred_fallthru
        _
      %p888 = scmp.le.s32.totalorder 2, %s17
      // Predicated region
      $region49: #{tpu_custom_call.1} parent=5 // pred_check
        %p889 = pneg %p888
      $region50: #{tpu_custom_call.1} parent=5 // pred_check_branch
        %891 = sbr.rel (%p889) target = $region52
      $region51: #{tpu_custom_call.1} parent=5 // pred_region
        %s892 = ssub.s32 %s17, 2
        // Predicated region
        $region53: #{tpu_custom_call.1} parent=51 // pred_check
          %p893 = pneg %p176
        $region54: #{tpu_custom_call.1} parent=51 // pred_check_branch
          %895 = sbr.rel (%p893) target = $region56
        $region55: #{tpu_custom_call.1} parent=51 // pred_region
          %s896 = sand.u32 %s161, 1
          %s897 = scalar_lea.sflag [#allocation5], %s896
          %s898 = sand.u32 %s161, 1
          %s899 = smul.addr %s898, 16
          %s900 = scalar_lea.vmem [#allocation6], %s899
          %901 = dma.done %s897, 256
        $region56: #{tpu_custom_call.1} parent=51 // pred_fallthru
          _
      $region52: #{tpu_custom_call.1} parent=5 // pred_fallthru
        _
    $region6: #{tpu_custom_call.1} parent=1 // loop_footer
      %s21 = sadd.s32 1, %s17
    $region7: #{tpu_custom_call.1} parent=1 // loop_footer_branch
      %16 = sbr.rel target = $region3
    $region8: #{tpu_custom_call.1} parent=1 // loop_exit
      _
    %902 = vsyncpa [#allocation4], 1
    %s903 = scalar_lea.sflag [#allocation4], 1
    %904 = vsyncpa %s903, 1
    %905 = vsyncpa [#allocation5], 1
    %s906 = scalar_lea.sflag [#allocation5], 1
    %907 = vsyncpa %s906, 1

</llo_original>
